<compile_context>
chip_gen: v6e
topology: v6e:2x2x1
jax: 0.10.0
libtpu: 0.0.40
codegen_flags: <defaults>
</compile_context>

<pallas_src>
import numpy as np
import jax
import jax.numpy as jnp
from jax.experimental import pallas as pl
from jax.experimental.pallas import tpu as pltpu


def _make_kernel(offsets, lengths, T, batches_per_block):
    """Builds a kernel body with the static group schedule baked in."""
    G = len(lengths)

    def kernel(x_ref, w_ref, b_ref, o_ref):
        # x_ref: (batches_per_block * T, D_in)
        # w_ref: (G, D_in, D_out)   -- resident across grid steps
        # b_ref: (G, 1, D_out)      -- resident, f32
        # o_ref: (batches_per_block * T, D_out)
        for g in range(G):
            off, ln = offsets[g], lengths[g]
            if ln == 0:
                continue
            w_g = w_ref[g]                                   # (D_in, D_out)
            # Gather this group's rows from every batch element of the tile
            # and flatten them into ONE 2-D MXU matmul.
            segs = [x_ref[bi * T + off: bi * T + off + ln, :]
                    for bi in range(batches_per_block)]
            xg = segs[0] if batches_per_block == 1 else jnp.concatenate(segs, axis=0)
            yg = jnp.dot(xg, w_g, preferred_element_type=jnp.float32)
            yg = (yg + b_ref[g]).astype(o_ref.dtype)         # (1, D_out) bias bcast
            if batches_per_block == 1:
                o_ref[off: off + ln, :] = yg
            else:
                for bi in range(batches_per_block):
                    o_ref[bi * T + off: bi * T + off + ln, :] = \
                        yg[bi * ln: (bi + 1) * ln, :]

    return kernel


def _pick_batches_per_block(B, T, D_in, D_out, itemsize, budget_bytes=8 << 20):
    """Largest batch tile that (a) divides B, (b) keeps the row block 8-aligned
    (or covers the full array), (c) fits a per-block VMEM budget (double
    buffered), and (d) leaves >= 2 grid steps for megacore when possible."""
    legal = [c for c in range(1, B + 1)
             if B % c == 0 and ((c * T) % 8 == 0 or c == B)]

    def ok(c):
        blk = 2 * c * T * (D_in + D_out) * itemsize   # x + out, double-buffered
        return blk <= budget_bytes and (B // c) >= min(2, B)

    good = [c for c in legal if ok(c)]
    if good:
        return max(good)
    return min(legal)   # always non-empty: c == B is legal (full-array block)


def groupwise_projection(x, weights, biases, len_groups, *, compute_dtype=None):
    """Applies a separate Linear layer to each (static) token group.

    Args:
      x:        (B, T, D_in)
      weights:  (G, D_in, D_out)   (already transposed vs. torch's (out, in))
      biases:   (G, D_out)
      len_groups: static python list of ints, sum == T
      compute_dtype: optional lower-precision MXU input dtype (e.g. bf16);
        accumulation and bias add stay in f32.

    Returns:
      (B, T, D_out) in x's original dtype.
    """
    B, T, D_in = x.shape
    G, D_in_w, D_out = weights.shape
    assert D_in_w == D_in
    assert len(len_groups) == G
    lengths = [int(l) for l in len_groups]
    assert sum(lengths) == T
    offsets = [0]
    for l in lengths[:-1]:
        offsets.append(offsets[-1] + l)

    out_dtype = x.dtype

    if compute_dtype is not None and jnp.dtype(compute_dtype) != x.dtype:
        x = x.astype(compute_dtype)
        weights = weights.astype(compute_dtype)

    biases_3d = biases.astype(jnp.float32)[:, None, :]        # (G, 1, D_out)

    # Free leading-dim reshape: no HBM copy.
    x_flat = x.reshape(B * T, D_in)

    isz = jnp.dtype(x.dtype).itemsize
    bpb = _pick_batches_per_block(B, T, D_in, D_out, isz)
    rows_per_block = bpb * T
    n_blocks = B // bpb

    kernel = _make_kernel(offsets, lengths, T, bpb)

    # Explicit VMEM budget with headroom, re-derived from the actual block
    # footprint (x/out double-buffered + resident weights/biases).
    need = (2 * rows_per_block * (D_in * isz + D_out * jnp.dtype(out_dtype).itemsize)
            + 2 * G * D_in * D_out * isz + 2 * G * D_out * 4)
    vmem_limit = int(min(max(2 * need + (4 << 20), 32 << 20), 64 << 20))
    # Note: for very large T (or huge G*D_in*D_out) an additional token /
    # weight tiling axis would be required; not needed at these shapes.

    out_flat = pl.pallas_call(
        kernel,
        out_shape=jax.ShapeDtypeStruct((B * T, D_out), out_dtype),
        grid_spec=pltpu.PrefetchScalarGridSpec(
            num_scalar_prefetch=0,
            grid=(n_blocks,),
            in_specs=[
                pl.BlockSpec((rows_per_block, D_in), lambda i: (i, 0)),
                pl.BlockSpec((G, D_in, D_out), lambda i: (0, 0, 0)),
                pl.BlockSpec((G, 1, D_out), lambda i: (0, 0, 0)),
            ],
            out_specs=pl.BlockSpec((rows_per_block, D_out), lambda i: (i, 0)),
        ),
        compiler_params=pltpu.CompilerParams(
            dimension_semantics=("parallel",),
            vmem_limit_bytes=vmem_limit),
    )(x_flat, weights, biases_3d)

    return out_flat.reshape(B, T, D_out)


def _init_params(key, num_groups, input_dim, output_dim):
    """Deterministic per-group Linear params (PyTorch-default-style uniform)."""
    ws, bs = [], []
    bound = 1.0 / float(np.sqrt(input_dim))
    for g in range(num_groups):
        kw, kb, key = jax.random.split(jax.random.fold_in(key, g), 3)
        # stored as (D_in, D_out) so the kernel does x @ W directly
        w = jax.random.uniform(kw, (input_dim, output_dim), jnp.float32,
                               minval=-bound, maxval=bound)
        b = jax.random.uniform(kb, (output_dim,), jnp.float32,
                               minval=-bound, maxval=bound)
        ws.append(w)
        bs.append(b)
    return jnp.stack(ws, axis=0), jnp.stack(bs, axis=0)


if __name__ == "__main__":
    key = jax.random.PRNGKey(0)

    # small shapes consistent with the module's forward
    B, T, D_in, D_out = 2, 8, 32, 16
    len_groups = [3, 2, 3]                 # sums to T, one Linear per group
    G = len(len_groups)

    kx, kp = jax.random.split(key)
    x = jax.random.normal(kx, (B, T, D_in), jnp.float32)
    weights, biases = _init_params(kp, G, D_in, D_out)

    out = groupwise_projection(x, weights, biases, len_groups)
    out = jax.block_until_ready(out)

    # reference in plain JAX (matches the PyTorch loop + cat semantics)
    offs = np.concatenate([[0], np.cumsum(len_groups)]).astype(np.int32)
    ref_pieces = [
        jnp.einsum("btd,do->bto",
                   x[:, int(offs[g]):int(offs[g + 1]), :], weights[g],
                   preferred_element_type=jnp.float32) + biases[g]
        for g in range(G)
    ]
    ref = jnp.concatenate(ref_pieces, axis=1)

    assert out.shape == (B, T, D_out), out.shape
    np.testing.assert_allclose(np.asarray(out), np.asarray(ref),
                               rtol=1e-5, atol=1e-5)
    print("KERNEL_OK")
</pallas_src>

<mosaic_0001>
module attributes {stable_mosaic.version = 11 : i64} {
  func.func @kernel(%arg0: i32, %arg1: memref<8x32xf32, #tpu.memory_space<vmem>>, %arg2: memref<3x32x16xf32, #tpu.memory_space<vmem>>, %arg3: memref<3x1x16xf32, #tpu.memory_space<vmem>>, %arg4: memref<8x16xf32, #tpu.memory_space<vmem>>) attributes {dimension_semantics = [#tpu.dimension_semantics<parallel>], iteration_bounds = array<i64: 2>, scalar_prefetch = 0 : i64, scratch_operands = 0 : i64, tpu.core_type = #tpu.core_type<tc>, window_params = [{transform_indices = @transform_0, window_bounds = array<i64: 8, 32>}, {pipeline_mode = #tpu.pipeline_mode<synchronous>, transform_indices = @transform_1, window_bounds = array<i64: 3, 32, 16>}, {pipeline_mode = #tpu.pipeline_mode<synchronous>, transform_indices = @transform_2, window_bounds = array<i64: 3, 1, 16>}, {transform_indices = @transform_3, window_bounds = array<i64: 8, 16>}]} {
    %c0 = arith.constant 0 : index
    %c0_0 = arith.constant 0 : index
    %c0_1 = arith.constant 0 : index
    %0 = vector.load %arg2[%c0, %c0_0, %c0_1] : memref<3x32x16xf32, #tpu.memory_space<vmem>>, vector<1x32x16xf32>
    %1 = vector.shape_cast %0 : vector<1x32x16xf32> to vector<32x16xf32>
    %c0_2 = arith.constant 0 : index
    %c0_3 = arith.constant 0 : index
    %2 = vector.load %arg1[%c0_2, %c0_3] : memref<8x32xf32, #tpu.memory_space<vmem>>, vector<3x32xf32>
    %cst = arith.constant dense<0.000000e+00> : vector<3x16xf32>
    %3 = tpu.matmul %2, %1, %cst {dimension_numbers = #tpu.dot_dimension_numbers<[1], [0], [0], [1], [0, 0, 1, 1], [], []>} : vector<3x32xf32>, vector<32x16xf32>, vector<3x16xf32> -> vector<3x16xf32>
    %c0_4 = arith.constant 0 : index
    %c0_5 = arith.constant 0 : index
    %c0_6 = arith.constant 0 : index
    %4 = vector.load %arg3[%c0_4, %c0_5, %c0_6] : memref<3x1x16xf32, #tpu.memory_space<vmem>>, vector<1x1x16xf32>
    %5 = vector.shape_cast %4 : vector<1x1x16xf32> to vector<1x16xf32>
    %6 = vector.broadcast %5 : vector<1x16xf32> to vector<3x16xf32>
    %7 = arith.addf %3, %6 : vector<3x16xf32>
    %c0_7 = arith.constant 0 : index
    %c0_8 = arith.constant 0 : index
    %8 = vector.load %arg4[%c0_7, %c0_8] : memref<8x16xf32, #tpu.memory_space<vmem>>, vector<3x16xf32>
    tpu.vector_store %arg4[%c0_7, %c0_8], %7 {strides = array<i32>} : memref<8x16xf32, #tpu.memory_space<vmem>>, vector<3x16xf32>,
    %c1 = arith.constant 1 : index
    %c0_9 = arith.constant 0 : index
    %c0_10 = arith.constant 0 : index
    %9 = vector.load %arg2[%c1, %c0_9, %c0_10] : memref<3x32x16xf32, #tpu.memory_space<vmem>>, vector<1x32x16xf32>
    %10 = vector.shape_cast %9 : vector<1x32x16xf32> to vector<32x16xf32>
    %c3 = arith.constant 3 : index
    %c0_11 = arith.constant 0 : index
    %11 = vector.load %arg1[%c3, %c0_11] : memref<8x32xf32, #tpu.memory_space<vmem>>, vector<2x32xf32>
    %cst_12 = arith.constant dense<0.000000e+00> : vector<2x16xf32>
    %12 = tpu.matmul %11, %10, %cst_12 {dimension_numbers = #tpu.dot_dimension_numbers<[1], [0], [0], [1], [0, 0, 1, 1], [], []>} : vector<2x32xf32>, vector<32x16xf32>, vector<2x16xf32> -> vector<2x16xf32>
    %c1_13 = arith.constant 1 : index
    %c0_14 = arith.constant 0 : index
    %c0_15 = arith.constant 0 : index
    %13 = vector.load %arg3[%c1_13, %c0_14, %c0_15] : memref<3x1x16xf32, #tpu.memory_space<vmem>>, vector<1x1x16xf32>
    %14 = vector.shape_cast %13 : vector<1x1x16xf32> to vector<1x16xf32>
    %15 = vector.broadcast %14 : vector<1x16xf32> to vector<2x16xf32>
    %16 = arith.addf %12, %15 : vector<2x16xf32>
    %c3_16 = arith.constant 3 : index
    %c0_17 = arith.constant 0 : index
    %17 = vector.load %arg4[%c3_16, %c0_17] : memref<8x16xf32, #tpu.memory_space<vmem>>, vector<2x16xf32>
    tpu.vector_store %arg4[%c3_16, %c0_17], %16 {strides = array<i32>} : memref<8x16xf32, #tpu.memory_space<vmem>>, vector<2x16xf32>,
    %c2 = arith.constant 2 : index
    %c0_18 = arith.constant 0 : index
    %c0_19 = arith.constant 0 : index
    %18 = vector.load %arg2[%c2, %c0_18, %c0_19] : memref<3x32x16xf32, #tpu.memory_space<vmem>>, vector<1x32x16xf32>
    %19 = vector.shape_cast %18 : vector<1x32x16xf32> to vector<32x16xf32>
    %c5 = arith.constant 5 : index
    %c0_20 = arith.constant 0 : index
    %20 = vector.load %arg1[%c5, %c0_20] : memref<8x32xf32, #tpu.memory_space<vmem>>, vector<3x32xf32>
    %cst_21 = arith.constant dense<0.000000e+00> : vector<3x16xf32>
    %21 = tpu.matmul %20, %19, %cst_21 {dimension_numbers = #tpu.dot_dimension_numbers<[1], [0], [0], [1], [0, 0, 1, 1], [], []>} : vector<3x32xf32>, vector<32x16xf32>, vector<3x16xf32> -> vector<3x16xf32>
    %c2_22 = arith.constant 2 : index
    %c0_23 = arith.constant 0 : index
    %c0_24 = arith.constant 0 : index
    %22 = vector.load %arg3[%c2_22, %c0_23, %c0_24] : memref<3x1x16xf32, #tpu.memory_space<vmem>>, vector<1x1x16xf32>
    %23 = vector.shape_cast %22 : vector<1x1x16xf32> to vector<1x16xf32>
    %24 = vector.broadcast %23 : vector<1x16xf32> to vector<3x16xf32>
    %25 = arith.addf %21, %24 : vector<3x16xf32>
    %c5_25 = arith.constant 5 : index
    %c0_26 = arith.constant 0 : index
    %26 = vector.load %arg4[%c5_25, %c0_26] : memref<8x16xf32, #tpu.memory_space<vmem>>, vector<3x16xf32>
    tpu.vector_store %arg4[%c5_25, %c0_26], %25 {strides = array<i32>} : memref<8x16xf32, #tpu.memory_space<vmem>>, vector<3x16xf32>,
    return
  }
  func.func @transform_0(%arg0: i32) -> (i32, i32) {
    %c0_i32 = arith.constant 0 : i32
    %c0_i32_0 = arith.constant 0 : i32
    return %arg0, %c0_i32 : i32, i32
  }
  func.func @transform_1(%arg0: i32) -> (i32, i32, i32) {
    %c0_i32 = arith.constant 0 : i32
    %c0_i32_0 = arith.constant 0 : i32
    %c0_i32_1 = arith.constant 0 : i32
    %c0_i32_2 = arith.constant 0 : i32
    return %c0_i32, %c0_i32_0, %c0_i32_1 : i32, i32, i32
  }
  func.func @transform_2(%arg0: i32) -> (i32, i32, i32) {
    %c0_i32 = arith.constant 0 : i32
    %c0_i32_0 = arith.constant 0 : i32
    %c0_i32_1 = arith.constant 0 : i32
    %c0_i32_2 = arith.constant 0 : i32
    return %c0_i32, %c0_i32_0, %c0_i32_1 : i32, i32, i32
  }
  func.func @transform_3(%arg0: i32) -> (i32, i32) {
    %c0_i32 = arith.constant 0 : i32
    %c0_i32_0 = arith.constant 0 : i32
    return %arg0, %c0_i32 : i32, i32
  }
}

</mosaic_0001>

<llo_original>
// kernel: tpu_custom_call.1
$region0: #{tpu_custom_call.1}
  #allocation0 [shape = 'u32[]', space=smem, size = 0x4, offset = 0x4, fixed_abs, tag = 'smem constant byte address 0x4 - core index']
  #allocation1 [shape = 'u32[144,128]{1,0:T(1,128)}', space=vmem, size = 0x12000, scoped, tag = 'internal scratch']
  %s0 = inlined_call_operand.vmem [shape: f32[16,32], index: 0, kind: input, shape index: {}]
  %s1 = inlined_call_operand.vmem [shape: f32[3,32,16], index: 1, kind: input, shape index: {}]
  %s2 = inlined_call_operand.vmem [shape: f32[3,1,16], index: 2, kind: input, shape index: {}]
  %s3 = inlined_call_operand.hbm [shape: f32[16,16], index: 3, kind: output, shape index: {}]
  %s4 = sld [smem:[#allocation0]]
  $region45: #{tpu_custom_call.1} parent=0
    _
  %s6 = ssub.s32 1, %s4
  %s7 = scalar_select 0, %s6, %s4
  $region1: #{tpu_custom_call.1} parent=0
    #allocation2 [shape = 'u8[8192]{0}', space=vmem, size = 0x2000, scoped, tag = 'output window, operand 0']
    #allocation3 [shape = 's32[2]{0}', space=sflag, size = 0x8, scoped, tag = 'scoped memory for tpu_custom_call.1']
    %8 = vsyncpa [#allocation3], 0
    %s9 = scalar_lea.sflag [#allocation3], 1
    %10 = vsyncpa %s9, 0
    loop: start=0, step=1, limit=4
    $region2: #{tpu_custom_call.1} parent=1 // loop_pre_header
      _
    $region3: #{tpu_custom_call.1} parent=1 // loop_header
      %s12 = sphi 0, %s16
      %p13 = scmp.ge.s32.totalorder %s12, 4
      %s22 = sphi 0, %s24
      %s25 = sphi 0, %s22
      %s26 = sphi 0, %s25
      %s42 = sphi 0, %s26
      %s46 = sphi 0, %s46
      %s48 = sphi 0, %s46
      %s49 = sphi 0, %s48
      %s63 = sphi 0, %s49
      %s67 = sphi 0, %s67
      %s69 = sphi 0, %s67
      %s70 = sphi 0, %s69
      %s84 = sphi 0, %s70
      %s90 = sphi 0, %s92
      %s93 = sphi 0, %s90
      %s94 = sphi 0, %s93
      %s110 = sphi 0, %s94
    $region4: #{tpu_custom_call.1} parent=1 // loop_header_branch
      %15 = sbr.rel (%p13) target = $region8
    $region5: #{tpu_custom_call.1} parent=1 // loop_body
      %s17 = ssub.s32 %s12, 1
      %s18 = ssub.s32 %s12, 2
      %s19 = sadd.s32 %s12, 1
      %s20 = ssub.s32 %s12, %s19
      %p21 = scmp.eq.s32.totalorder %s20, 0
      %s23 = sadd.s32 %s22, 1
      %s24 = scalar_select %p21, %s22, %s23
      %p27 = pneg %p21
      %p28 = scmp.eq.s32.totalorder %s12, 1
      %p29 = por %p27, %p28
      %p30 = scmp.ne.s32.totalorder %s22, %s25
      %p31 = scmp.eq.s32.totalorder %s12, 0
      %p32 = por %p30, %p31
      %p33 = scmp.ne.s32.totalorder %s22, %s25
      %p34 = scmp.eq.s32.totalorder %s17, 1
      %p35 = por %p33, %p34
      %p36 = scmp.ne.s32.totalorder %s25, %s26
      %p37 = scmp.eq.s32.totalorder %s17, 0
      %p38 = por %p36, %p37
      %p39 = scmp.ne.s32.totalorder %s25, %s26
      %p40 = scmp.eq.s32.totalorder %s18, 1
      %p41 = por %p39, %p40
      %p43 = scmp.ne.s32.totalorder %s26, %s42
      %p44 = scmp.eq.s32.totalorder %s18, 0
      %p45 = por %p43, %p44
      %s47 = sadd.s32 %s46, 1
      %p50 = scmp.eq.s32.totalorder %s12, 1
      %p51 = scmp.ne.s32.totalorder %s46, %s48
      %p52 = scmp.eq.s32.totalorder %s12, 0
      %p53 = por %p51, %p52
      %p54 = scmp.ne.s32.totalorder %s46, %s48
      %p55 = scmp.eq.s32.totalorder %s17, 1
      %p56 = por %p54, %p55
      %p57 = scmp.ne.s32.totalorder %s48, %s49
      %p58 = scmp.eq.s32.totalorder %s17, 0
      %p59 = por %p57, %p58
      %p60 = scmp.ne.s32.totalorder %s48, %s49
      %p61 = scmp.eq.s32.totalorder %s18, 1
      %p62 = por %p60, %p61
      %p64 = scmp.ne.s32.totalorder %s49, %s63
      %p65 = scmp.eq.s32.totalorder %s18, 0
      %p66 = por %p64, %p65
      %s68 = sadd.s32 %s67, 1
      %p71 = scmp.eq.s32.totalorder %s12, 1
      %p72 = scmp.ne.s32.totalorder %s67, %s69
      %p73 = scmp.eq.s32.totalorder %s12, 0
      %p74 = por %p72, %p73
      %p75 = scmp.ne.s32.totalorder %s67, %s69
      %p76 = scmp.eq.s32.totalorder %s17, 1
      %p77 = por %p75, %p76
      %p78 = scmp.ne.s32.totalorder %s69, %s70
      %p79 = scmp.eq.s32.totalorder %s17, 0
      %p80 = por %p78, %p79
      %p81 = scmp.ne.s32.totalorder %s69, %s70
      %p82 = scmp.eq.s32.totalorder %s18, 1
      %p83 = por %p81, %p82
      %p85 = scmp.ne.s32.totalorder %s70, %s84
      %p86 = scmp.eq.s32.totalorder %s18, 0
      %p87 = por %p85, %p86
      %s88 = ssub.s32 %s12, %s19
      %p89 = scmp.eq.s32.totalorder %s88, 0
      %s91 = sadd.s32 %s90, 1
      %s92 = scalar_select %p89, %s90, %s91
      %p95 = pneg %p89
      %p96 = scmp.eq.s32.totalorder %s12, 1
      %p97 = por %p95, %p96
      %p98 = scmp.ne.s32.totalorder %s90, %s93
      %p99 = scmp.eq.s32.totalorder %s12, 0
      %p100 = por %p98, %p99
      %p101 = scmp.ne.s32.totalorder %s90, %s93
      %p102 = scmp.eq.s32.totalorder %s17, 1
      %p103 = por %p101, %p102
      %p104 = scmp.ne.s32.totalorder %s93, %s94
      %p105 = scmp.eq.s32.totalorder %s17, 0
      %p106 = por %p104, %p105
      %p107 = scmp.ne.s32.totalorder %s93, %s94
      %p108 = scmp.eq.s32.totalorder %s18, 1
      %p109 = por %p107, %p108
      %p111 = scmp.ne.s32.totalorder %s94, %s110
      %p112 = scmp.eq.s32.totalorder %s18, 0
      %p113 = por %p111, %p112
      %p114 = scmp.le.s32.totalorder 1, %s12
      %p115 = scmp.lt.s32.totalorder %s12, 3
      %p116 = pnand %p114, %p115
      %p117 = pneg %p116
      // Predicated region
      $region9: #{tpu_custom_call.1} parent=5 // pred_check
        _
      $region10: #{tpu_custom_call.1} parent=5 // pred_check_branch
        %119 = sbr.rel (%p116) target = $region12
      $region11: #{tpu_custom_call.1} parent=5 // pred_region
        %s120 = ssub.s32 %s12, 1
        // Predicated region
        $region13: #{tpu_custom_call.1} parent=11 // pred_check
          %p121 = pneg %p59
        $region14: #{tpu_custom_call.1} parent=11 // pred_check_branch
          %123 = sbr.rel (%p121) target = $region16
        $region15: #{tpu_custom_call.1} parent=11 // pred_region
          _
        $region16: #{tpu_custom_call.1} parent=11 // pred_fallthru
          _
        // Predicated region
        $region17: #{tpu_custom_call.1} parent=11 // pred_check
          %p124 = pneg %p80
        $region18: #{tpu_custom_call.1} parent=11 // pred_check_branch
          %126 = sbr.rel (%p124) target = $region20
        $region19: #{tpu_custom_call.1} parent=11 // pred_region
          _
        $region20: #{tpu_custom_call.1} parent=11 // pred_fallthru
          _
      $region12: #{tpu_custom_call.1} parent=5 // pred_fallthru
        _
      %p127 = scmp.lt.s32.totalorder %s12, 2
      // Predicated region
      $region21: #{tpu_custom_call.1} parent=5 // pred_check
        %p128 = pneg %p127
      $region22: #{tpu_custom_call.1} parent=5 // pred_check_branch
        %130 = sbr.rel (%p128) target = $region24
      $region23: #{tpu_custom_call.1} parent=5 // pred_region
        // Predicated region
        $region25: #{tpu_custom_call.1} parent=23 // pred_check
          %p131 = pneg %p32
        $region26: #{tpu_custom_call.1} parent=23 // pred_check_branch
          %133 = sbr.rel (%p131) target = $region28
        $region27: #{tpu_custom_call.1} parent=23 // pred_region
          %p134 = scmp.lt.s32.totalorder %s12, 1
          %s135 = scalar_select %p134, %s12, 1
          %s136 = smul.addr %s135, 8
          %s137 = scalar_lea.vmem %s0, %s136
        $region28: #{tpu_custom_call.1} parent=23 // pred_fallthru
          _
      $region24: #{tpu_custom_call.1} parent=5 // pred_fallthru
        _
      %p138 = scmp.le.s32.totalorder 1, %s12
      %p139 = scmp.lt.s32.totalorder %s12, 3
      %p140 = pnand %p138, %p139
      %p141 = pneg %p140
      // Predicated region
      $region29: #{tpu_custom_call.1} parent=5 // pred_check
        _
      $region30: #{tpu_custom_call.1} parent=5 // pred_check_branch
        %143 = sbr.rel (%p140) target = $region32
      $region31: #{tpu_custom_call.1} parent=5 // pred_region
        %s144 = ssub.s32 %s12, 1
        %p145 = scmp.lt.s32.totalorder %s17, 1
        %s146 = scalar_select %p145, %s17, 1
        %s147 = smul.addr %s146, 8
        %s148 = scalar_lea.vmem %s0, %s147
        %p149 = pneg %p38
        %p150 = pneg %p35
        %p151 = pneg %p59
        %p152 = pneg %p56
        %p153 = pneg %p80
        %p154 = pneg %p77
        %p155 = pneg %p106
        %p156 = pneg %p103
        %s157 = sand.u32 %s93, 1
        %s158 = scalar_lea.sflag [#allocation3], %s157
        %s159 = sand.u32 %s93, 1
        %s160 = smul.addr %s159, 8
        %s161 = scalar_lea.vmem [#allocation2], %s160
        %p162 = scmp.lt.s32.totalorder %s17, 1
        %s163 = scalar_select %p162, %s17, 1
        %s164 = smul.addr %s163, 8
        %s165 = scalar_lea.vmem %s0, %s164
        %v166 = vld [vmem:[%s1] sm:$0xff]
        %v167 = vld [vmem:[%s1 + $0x8] sm:$0xff]
        %v168 = vld [vmem:[%s1 + $0x10] sm:$0xff]
        %v169 = vld [vmem:[%s1 + $0x18] sm:$0xff]
        %v170 = vld [vmem:[%s165] sm:$0x7]
        %v171 = vld [vmem:[%s2] sm:$0x1]
        %v173 = vlaneseq
        %v174 = vshrl.u32 %v173, 7
        %v175 = vsub.s32 0, %v174
        %v176 = vrot.slane %v171, %v175
        %vm178 = vcmask 261120
        %v180 = vsel %vm178, %v170, 0
        %182 = vmatprep.subr.mxu0 0.0
        %183 = vmatpush1.msra.mxu0 0.0
        %184 = vmatprep.subr.mxu0 0.0
        %185 = vmatpush1.msra.mxu0 0.0
        %186 = vmatprep.subr.mxu0 0.0
        %187 = vmatpush1.msra.mxu0 0.0
        %188 = vmatprep.subr.mxu0 0.0
        %189 = vmatpush1.msra.mxu0 0.0
        %190 = vmatprep.subr.mxu0 0.0
        %191 = vmatpush1.msra.mxu0 0.0
        %192 = vmatprep.subr.mxu0 0.0
        %193 = vmatpush1.msra.mxu0 0.0
        %194 = vmatprep.subr.mxu0 0.0
        %195 = vmatpush1.msra.mxu0 0.0
        %196 = vmatprep.subr.mxu0 0.0
        %197 = vmatpush1.msra.mxu0 0.0
        %198 = vmatprep.subr.mxu0 0.0
        %199 = vmatpush1.msra.mxu0 0.0
        %200 = vmatprep.subr.mxu0 0.0
        %201 = vmatpush1.msra.mxu0 0.0
        %202 = vmatprep.subr.mxu0 0.0
        %203 = vmatpush1.msra.mxu0 0.0
        %204 = vmatprep.subr.mxu0 0.0
        %205 = vmatpush1.msra.mxu0 0.0
        %206 = vmatprep.subr.mxu0 0.0
        %207 = vmatpush1.msra.mxu0 %v169
        %208 = vmatprep.subr.mxu0 0.0
        %209 = vmatpush1.msra.mxu0 %v168
        %210 = vmatprep.subr.mxu0 0.0
        %211 = vmatpush1.msra.mxu0 %v167
        %212 = vmatprep.subr.mxu0 0.0
        %213 = vmatpush1.msra.mxu0 %v166
        %214 = vmatprep.subr.mxu0 0.0
        %215 = vmatpush2.msra.mxu0 0.0
        %216 = vmatprep.subr.mxu0 0.0
        %217 = vmatpush2.msra.mxu0 0.0
        %218 = vmatprep.subr.mxu0 0.0
        %219 = vmatpush2.msra.mxu0 0.0
        %220 = vmatprep.subr.mxu0 0.0
        %221 = vmatpush2.msra.mxu0 0.0
        %222 = vmatprep.subr.mxu0 0.0
        %223 = vmatpush2.msra.mxu0 0.0
        %224 = vmatprep.subr.mxu0 0.0
        %225 = vmatpush2.msra.mxu0 0.0
        %226 = vmatprep.subr.mxu0 0.0
        %227 = vmatpush2.msra.mxu0 0.0
        %228 = vmatprep.subr.mxu0 0.0
        %229 = vmatpush2.msra.mxu0 0.0
        %230 = vmatprep.subr.mxu0 0.0
        %231 = vmatpush2.msra.mxu0 0.0
        %232 = vmatprep.subr.mxu0 0.0
        %233 = vmatpush2.msra.mxu0 0.0
        %234 = vmatprep.subr.mxu0 0.0
        %235 = vmatpush2.msra.mxu0 0.0
        %236 = vmatprep.subr.mxu0 0.0
        %237 = vmatpush2.msra.mxu0 0.0
        %238 = vmatprep.subr.mxu0 0.0
        %239 = vmatpush2.msra.mxu0 0.0
        %240 = vmatprep.subr.mxu0 0.0
        %241 = vmatpush2.msra.mxu0 0.0
        %242 = vmatprep.subr.mxu0 0.0
        %243 = vmatpush2.msra.mxu0 0.0
        %244 = vmatprep.subr.mxu0 0.0
        %245 = vmatpush2.msra.mxu0 0.0
        %246 = vmatprep.mubr.f32.mxu0 0.0
        %247 = vmatmul.mubr.f32.gmra.mxu0 %v180
        %v248 = vpop.f32.mrf.mxu0
        %v249 = vadd.f32 %v176, %v248
        %v250 = vpop.f32.mrf.mxu0
        %251 = vdwg.mxu0
        %vm252 = vcmask 124928
        %253 = vst.msk [vmem:[%s161] sm:$0x7] %vm252, %v249
        %s254 = scalar_lea.vmem %s1, 32
        %v255 = vld [vmem:[%s254] sm:$0xff]
        %v256 = vld [vmem:[%s254 + $0x8] sm:$0xff]
        %v257 = vld [vmem:[%s254 + $0x10] sm:$0xff]
        %v258 = vld [vmem:[%s254 + $0x18] sm:$0xff]
        %v259 = vld [vmem:[%s165 + $0x3] sm:$0x3]
        %s260 = scalar_lea.vmem %s2, 1
        %v261 = vld [vmem:[%s260] sm:$0x1]
        %v263 = vlaneseq
        %v264 = vshrl.u32 %v263, 7
        %v265 = vsub.s32 0, %v264
        %v266 = vrot.slane %v261, %v265
        %v269 = vsel %vm178, %v259, 0
        %271 = vmatprep.subr.mxu0 0.0
        %272 = vmatpush1.msra.mxu0 0.0
        %273 = vmatprep.subr.mxu0 0.0
        %274 = vmatpush1.msra.mxu0 0.0
        %275 = vmatprep.subr.mxu0 0.0
        %276 = vmatpush1.msra.mxu0 0.0
        %277 = vmatprep.subr.mxu0 0.0
        %278 = vmatpush1.msra.mxu0 0.0
        %279 = vmatprep.subr.mxu0 0.0
        %280 = vmatpush1.msra.mxu0 0.0
        %281 = vmatprep.subr.mxu0 0.0
        %282 = vmatpush1.msra.mxu0 0.0
        %283 = vmatprep.subr.mxu0 0.0
        %284 = vmatpush1.msra.mxu0 0.0
        %285 = vmatprep.subr.mxu0 0.0
        %286 = vmatpush1.msra.mxu0 0.0
        %287 = vmatprep.subr.mxu0 0.0
        %288 = vmatpush1.msra.mxu0 0.0
        %289 = vmatprep.subr.mxu0 0.0
        %290 = vmatpush1.msra.mxu0 0.0
        %291 = vmatprep.subr.mxu0 0.0
        %292 = vmatpush1.msra.mxu0 0.0
        %293 = vmatprep.subr.mxu0 0.0
        %294 = vmatpush1.msra.mxu0 0.0
        %295 = vmatprep.subr.mxu0 0.0
        %296 = vmatpush1.msra.mxu0 %v258
        %297 = vmatprep.subr.mxu0 0.0
        %298 = vmatpush1.msra.mxu0 %v257
        %299 = vmatprep.subr.mxu0 0.0
        %300 = vmatpush1.msra.mxu0 %v256
        %301 = vmatprep.subr.mxu0 0.0
        %302 = vmatpush1.msra.mxu0 %v255
        %303 = vmatprep.subr.mxu0 0.0
        %304 = vmatpush2.msra.mxu0 0.0
        %305 = vmatprep.subr.mxu0 0.0
        %306 = vmatpush2.msra.mxu0 0.0
        %307 = vmatprep.subr.mxu0 0.0
        %308 = vmatpush2.msra.mxu0 0.0
        %309 = vmatprep.subr.mxu0 0.0
        %310 = vmatpush2.msra.mxu0 0.0
        %311 = vmatprep.subr.mxu0 0.0
        %312 = vmatpush2.msra.mxu0 0.0
        %313 = vmatprep.subr.mxu0 0.0
        %314 = vmatpush2.msra.mxu0 0.0
        %315 = vmatprep.subr.mxu0 0.0
        %316 = vmatpush2.msra.mxu0 0.0
        %317 = vmatprep.subr.mxu0 0.0
        %318 = vmatpush2.msra.mxu0 0.0
        %319 = vmatprep.subr.mxu0 0.0
        %320 = vmatpush2.msra.mxu0 0.0
        %321 = vmatprep.subr.mxu0 0.0
        %322 = vmatpush2.msra.mxu0 0.0
        %323 = vmatprep.subr.mxu0 0.0
        %324 = vmatpush2.msra.mxu0 0.0
        %325 = vmatprep.subr.mxu0 0.0
        %326 = vmatpush2.msra.mxu0 0.0
        %327 = vmatprep.subr.mxu0 0.0
        %328 = vmatpush2.msra.mxu0 0.0
        %329 = vmatprep.subr.mxu0 0.0
        %330 = vmatpush2.msra.mxu0 0.0
        %331 = vmatprep.subr.mxu0 0.0
        %332 = vmatpush2.msra.mxu0 0.0
        %333 = vmatprep.subr.mxu0 0.0
        %334 = vmatpush2.msra.mxu0 0.0
        %335 = vmatprep.mubr.f32.mxu0 0.0
        %336 = vmatmul.mubr.f32.gmra.mxu0 %v269
        %v337 = vpop.f32.mrf.mxu0
        %v338 = vadd.f32 %v266, %v337
        %v339 = vpop.f32.mrf.mxu0
        %340 = vdwg.mxu0
        %vm341 = vcmask 123904
        %342 = vst.msk [vmem:[%s161 + $0x3] sm:$0x3] %vm341, %v338
        %s343 = scalar_lea.vmem %s1, 64
        %v344 = vld [vmem:[%s343] sm:$0xff]
        %v345 = vld [vmem:[%s343 + $0x8] sm:$0xff]
        %v346 = vld [vmem:[%s343 + $0x10] sm:$0xff]
        %v347 = vld [vmem:[%s343 + $0x18] sm:$0xff]
        %v348 = vld [vmem:[%s165 + $0x5] sm:$0x7]
        %s349 = scalar_lea.vmem %s2, 2
        %v350 = vld [vmem:[%s349] sm:$0x1]
        %v352 = vlaneseq
        %v353 = vshrl.u32 %v352, 7
        %v354 = vsub.s32 0, %v353
        %v355 = vrot.slane %v350, %v354
        %v358 = vsel %vm178, %v348, 0
        %360 = vmatprep.subr.mxu0 0.0
        %361 = vmatpush1.msra.mxu0 0.0
        %362 = vmatprep.subr.mxu0 0.0
        %363 = vmatpush1.msra.mxu0 0.0
        %364 = vmatprep.subr.mxu0 0.0
        %365 = vmatpush1.msra.mxu0 0.0
        %366 = vmatprep.subr.mxu0 0.0
        %367 = vmatpush1.msra.mxu0 0.0
        %368 = vmatprep.subr.mxu0 0.0
        %369 = vmatpush1.msra.mxu0 0.0
        %370 = vmatprep.subr.mxu0 0.0
        %371 = vmatpush1.msra.mxu0 0.0
        %372 = vmatprep.subr.mxu0 0.0
        %373 = vmatpush1.msra.mxu0 0.0
        %374 = vmatprep.subr.mxu0 0.0
        %375 = vmatpush1.msra.mxu0 0.0
        %376 = vmatprep.subr.mxu0 0.0
        %377 = vmatpush1.msra.mxu0 0.0
        %378 = vmatprep.subr.mxu0 0.0
        %379 = vmatpush1.msra.mxu0 0.0
        %380 = vmatprep.subr.mxu0 0.0
        %381 = vmatpush1.msra.mxu0 0.0
        %382 = vmatprep.subr.mxu0 0.0
        %383 = vmatpush1.msra.mxu0 0.0
        %384 = vmatprep.subr.mxu0 0.0
        %385 = vmatpush1.msra.mxu0 %v347
        %386 = vmatprep.subr.mxu0 0.0
        %387 = vmatpush1.msra.mxu0 %v346
        %388 = vmatprep.subr.mxu0 0.0
        %389 = vmatpush1.msra.mxu0 %v345
        %390 = vmatprep.subr.mxu0 0.0
        %391 = vmatpush1.msra.mxu0 %v344
        %392 = vmatprep.subr.mxu0 0.0
        %393 = vmatpush2.msra.mxu0 0.0
        %394 = vmatprep.subr.mxu0 0.0
        %395 = vmatpush2.msra.mxu0 0.0
        %396 = vmatprep.subr.mxu0 0.0
        %397 = vmatpush2.msra.mxu0 0.0
        %398 = vmatprep.subr.mxu0 0.0
        %399 = vmatpush2.msra.mxu0 0.0
        %400 = vmatprep.subr.mxu0 0.0
        %401 = vmatpush2.msra.mxu0 0.0
        %402 = vmatprep.subr.mxu0 0.0
        %403 = vmatpush2.msra.mxu0 0.0
        %404 = vmatprep.subr.mxu0 0.0
        %405 = vmatpush2.msra.mxu0 0.0
        %406 = vmatprep.subr.mxu0 0.0
        %407 = vmatpush2.msra.mxu0 0.0
        %408 = vmatprep.subr.mxu0 0.0
        %409 = vmatpush2.msra.mxu0 0.0
        %410 = vmatprep.subr.mxu0 0.0
        %411 = vmatpush2.msra.mxu0 0.0
        %412 = vmatprep.subr.mxu0 0.0
        %413 = vmatpush2.msra.mxu0 0.0
        %414 = vmatprep.subr.mxu0 0.0
        %415 = vmatpush2.msra.mxu0 0.0
        %416 = vmatprep.subr.mxu0 0.0
        %417 = vmatpush2.msra.mxu0 0.0
        %418 = vmatprep.subr.mxu0 0.0
        %419 = vmatpush2.msra.mxu0 0.0
        %420 = vmatprep.subr.mxu0 0.0
        %421 = vmatpush2.msra.mxu0 0.0
        %422 = vmatprep.subr.mxu0 0.0
        %423 = vmatpush2.msra.mxu0 0.0
        %424 = vmatprep.mubr.f32.mxu0 0.0
        %425 = vmatmul.mubr.f32.gmra.mxu0 %v358
        %v426 = vpop.f32.mrf.mxu0
        %v427 = vadd.f32 %v355, %v426
        %v428 = vpop.f32.mrf.mxu0
        %429 = vdwg.mxu0
        %430 = vst.msk [vmem:[%s161 + $0x5] sm:$0x7] %vm252, %v427
        %s431 = sand.u32 %s93, 1
        %s432 = scalar_lea.sflag [#allocation3], %s431
        %s433 = sand.u32 %s93, 1
        %s434 = smul.addr %s433, 8
        %s435 = scalar_lea.vmem [#allocation2], %s434
        // Predicated region
        $region33: #{tpu_custom_call.1} parent=31 // pred_check
          %p436 = pneg %p103
        $region34: #{tpu_custom_call.1} parent=31 // pred_check_branch
          %438 = sbr.rel (%p436) target = $region36
        $region35: #{tpu_custom_call.1} parent=31 // pred_region
          %s440 = ssub.s32 128, 128
          %441 = vsyncadd %s432, %s440
          %s442 = smul.addr %s17, 128
          %s443 = scalar_lea.hbm %s3, %s442
          %s445 = sshll.u32 %s435, 4
          %s446 = int_to_ptr.vmem [resolvable:$true] %s445
          %448 = dma.vmem_to_hbm [thread:$0]  %s446, 128, %s443, %s432
        $region36: #{tpu_custom_call.1} parent=31 // pred_fallthru
          _
      $region32: #{tpu_custom_call.1} parent=5 // pred_fallthru
        _
      %p449 = scmp.le.s32.totalorder 2, %s12
      // Predicated region
      $region37: #{tpu_custom_call.1} parent=5 // pred_check
        %p450 = pneg %p449
      $region38: #{tpu_custom_call.1} parent=5 // pred_check_branch
        %452 = sbr.rel (%p450) target = $region40
      $region39: #{tpu_custom_call.1} parent=5 // pred_region
        %s453 = ssub.s32 %s12, 2
        // Predicated region
        $region41: #{tpu_custom_call.1} parent=39 // pred_check
          %p454 = pneg %p109
        $region42: #{tpu_custom_call.1} parent=39 // pred_check_branch
          %456 = sbr.rel (%p454) target = $region44
        $region43: #{tpu_custom_call.1} parent=39 // pred_region
          %s457 = sand.u32 %s94, 1
          %s458 = scalar_lea.sflag [#allocation3], %s457
          %s459 = sand.u32 %s94, 1
          %s460 = smul.addr %s459, 8
          %s461 = scalar_lea.vmem [#allocation2], %s460
          %462 = dma.done %s458, 128
        $region44: #{tpu_custom_call.1} parent=39 // pred_fallthru
          _
      $region40: #{tpu_custom_call.1} parent=5 // pred_fallthru
        _
    $region6: #{tpu_custom_call.1} parent=1 // loop_footer
      %s16 = sadd.s32 1, %s12
    $region7: #{tpu_custom_call.1} parent=1 // loop_footer_branch
      %11 = sbr.rel target = $region3
    $region8: #{tpu_custom_call.1} parent=1 // loop_exit
      _
    %463 = vsyncpa [#allocation3], 1
    %s464 = scalar_lea.sflag [#allocation3], 1
    %465 = vsyncpa %s464, 1

</llo_original>
